<compile_context>
chip_gen: v7x
topology: tpu7x:2x2x1
jax: 0.10.0
libtpu: 0.0.40
codegen_flags: <defaults>
</compile_context>

<pallas_src>
import functools

import jax
import jax.numpy as jnp
from jax.experimental import pallas as pl
from jax.experimental.pallas import tpu as pltpu

LAYER_NORM_EPS = 1e-5
_LANE = 128
_SUBLANE = 8
_VMEM_TILE_BUDGET = 24 * 1024 * 1024      # working-set budget for tile choice
_VMEM_LIMIT_BYTES = 48 * 1024 * 1024      # scoped VMEM limit (safe on v5e/v6e/v7x)


def _round_up(x, m):
    return ((x + m - 1) // m) * m


def _layernorm_kernel(x_ref, w_ref, b_ref, o_ref, *, eps, valid_d):
    # x_ref: (tile_rows, d_padded)   w_ref/b_ref: (1, d_padded)
    x = x_ref[...].astype(jnp.float32)
    d_padded = x.shape[-1]

    if valid_d == d_padded:
        # Fast, lane-dense path: no masking needed.
        mean = jnp.mean(x, axis=-1, keepdims=True)
        centered = x - mean
        var = jnp.mean(centered * centered, axis=-1, keepdims=True)
    else:
        # d_model was padded up to a multiple of 128: reduce only valid lanes.
        lane = jax.lax.broadcasted_iota(jnp.int32, x.shape, dimension=1)
        mask = lane < valid_d
        inv_d = 1.0 / float(valid_d)
        xm = jnp.where(mask, x, 0.0)
        mean = jnp.sum(xm, axis=-1, keepdims=True) * inv_d
        centered = x - mean
        cm = jnp.where(mask, centered, 0.0)
        var = jnp.sum(cm * cm, axis=-1, keepdims=True) * inv_d

    inv_scale = jax.lax.rsqrt(var + eps)                       # EUP, ~free
    out = (centered * inv_scale) * w_ref[...].astype(jnp.float32) \
          + b_ref[...].astype(jnp.float32)
    o_ref[...] = out.astype(o_ref.dtype)


def _choose_tile_rows(rows, d_padded, in_itemsize, out_itemsize):
    """Pick the row tile.

    Largest power-of-two tile whose double-buffered in/out tiles + f32
    temporaries fit the VMEM budget, capped so the grid has >= 2 blocks when
    rows allow it (keeps both TensorCores busy on v7x). Among the remaining
    candidates, prefer one that divides `rows` exactly to avoid a wrapper-side
    row-padding copy of the whole residual.
    """
    # Per row: 2x in tile + 2x out tile (double-buffered) + ~2 f32 temporaries.
    per_row = d_padded * (2 * in_itemsize + 2 * out_itemsize + 2 * 4)
    candidates = (1024, 512, 256, 128, 64, 32, 16, 8)

    fits = [c for c in candidates if c * per_row <= _VMEM_TILE_BUDGET]
    if not fits:
        fits = [_SUBLANE]

    if rows > _SUBLANE:
        # Ensure at least 2 grid blocks so the "parallel" axis can be sharded
        # across the two TensorCores on v7x.
        half = _round_up((rows + 1) // 2, _SUBLANE)
        capped = [c for c in fits if c <= half]
        fits = capped if capped else [_SUBLANE]

    # Prefer the largest tile that divides rows exactly (no row-pad copy).
    for c in fits:
        if rows % c == 0:
            return c
    return fits[0]


def layer_norm(residual, w, b, *, eps=LAYER_NORM_EPS, tile_rows=None):
    """LayerNorm over the last axis of residual [batch, position, d_model]."""
    batch, position, d_model = residual.shape
    rows = batch * position

    # Pad d_model up to a multiple of 128 (lane-dense, unmasked stores).
    d_padded = _round_up(d_model, _LANE)
    d_pad = d_padded - d_model

    x2d = residual.reshape(rows, d_model)      # free: contiguous reshape
    w2d = w.reshape(1, d_model)
    b2d = b.reshape(1, d_model)
    if d_pad:
        x2d = jnp.pad(x2d, ((0, 0), (0, d_pad)))
        w2d = jnp.pad(w2d, ((0, 0), (0, d_pad)))
        b2d = jnp.pad(b2d, ((0, 0), (0, d_pad)))

    if tile_rows is None:
        tile_rows = _choose_tile_rows(
            rows, d_padded, x2d.dtype.itemsize, residual.dtype.itemsize)

    # Pad rows up to a multiple of the tile (ceil-div grid). For common GPT-2
    # shapes the tile divides rows exactly, so this is a no-op.
    rows_padded = _round_up(rows, tile_rows)
    if rows_padded != rows:
        x2d = jnp.pad(x2d, ((0, rows_padded - rows), (0, 0)))

    grid = (rows_padded // tile_rows,)

    out2d = pl.pallas_call(
        functools.partial(_layernorm_kernel, eps=eps, valid_d=d_model),
        out_shape=jax.ShapeDtypeStruct((rows_padded, d_padded), residual.dtype),
        grid_spec=pltpu.PrefetchScalarGridSpec(
            num_scalar_prefetch=0,
            grid=grid,
            in_specs=[
                pl.BlockSpec((tile_rows, d_padded), lambda i: (i, 0)),
                pl.BlockSpec((1, d_padded), lambda i: (0, 0)),
                pl.BlockSpec((1, d_padded), lambda i: (0, 0)),
            ],
            out_specs=pl.BlockSpec((tile_rows, d_padded), lambda i: (i, 0)),
        ),
        compiler_params=pltpu.CompilerParams(
            dimension_semantics=("parallel",),
            vmem_limit_bytes=_VMEM_LIMIT_BYTES,
        ),
    )(x2d, w2d, b2d)

    out2d = out2d[:rows, :d_model]
    return out2d.reshape(batch, position, d_model)


def _reference_layer_norm(residual, w, b, eps=LAYER_NORM_EPS):
    mean = jnp.mean(residual, axis=-1, keepdims=True)
    centered = residual - mean
    scale = jnp.sqrt(jnp.mean(centered ** 2, axis=-1, keepdims=True) + eps)
    return (centered / scale) * w + b


if __name__ == "__main__":
    key = jax.random.PRNGKey(0)

    # Test 1: small shapes consistent with the module config (d_model=768,
    # lane-aligned fast path), grid has >= 2 blocks, no row padding needed.
    batch, position, d_model = 2, 8, 768
    residual = jax.random.normal(key, (batch, position, d_model), dtype=jnp.float32)
    w = jnp.ones((d_model,), dtype=jnp.float32)   # nn.Parameter(torch.ones)
    b = jnp.zeros((d_model,), dtype=jnp.float32)  # nn.Parameter(torch.zeros)

    out = jax.block_until_ready(layer_norm(residual, w, b))
    ref = _reference_layer_norm(residual, w, b)
    assert out.shape == (batch, position, d_model)
    assert jnp.allclose(out, ref, atol=1e-5, rtol=1e-5), "mismatch vs reference (aligned)"

    # Test 2: awkward shapes (d_model not multiple of 128, rows not multiple
    # of the tile) exercising the padded / masked-lane path.
    batch2, position2, d_model2 = 2, 5, 32
    key2 = jax.random.PRNGKey(0)
    residual2 = jax.random.normal(key2, (batch2, position2, d_model2), dtype=jnp.float32)
    w2 = jnp.ones((d_model2,), dtype=jnp.float32)
    b2 = jnp.zeros((d_model2,), dtype=jnp.float32)

    out2 = jax.block_until_ready(layer_norm(residual2, w2, b2))
    ref2 = _reference_layer_norm(residual2, w2, b2)
    assert out2.shape == (batch2, position2, d_model2)
    assert jnp.allclose(out2, ref2, atol=1e-5, rtol=1e-5), "mismatch vs reference (padded)"

    print("KERNEL_OK")
</pallas_src>

<mosaic_0001>
module attributes {stable_mosaic.version = 11 : i64} {
  func.func @_layernorm_kernel(%arg0: i32, %arg1: memref<8x768xf32, #tpu.memory_space<vmem>>, %arg2: memref<1x768xf32, #tpu.memory_space<vmem>>, %arg3: memref<1x768xf32, #tpu.memory_space<vmem>>, %arg4: memref<8x768xf32, #tpu.memory_space<vmem>>) attributes {dimension_semantics = [#tpu.dimension_semantics<parallel>], iteration_bounds = array<i64: 2>, scalar_prefetch = 0 : i64, scratch_operands = 0 : i64, tpu.core_type = #tpu.core_type<tc>, window_params = [{transform_indices = @transform_0, window_bounds = array<i64: 8, 768>}, {pipeline_mode = #tpu.pipeline_mode<synchronous>, transform_indices = @transform_1, window_bounds = array<i64: 1, 768>}, {pipeline_mode = #tpu.pipeline_mode<synchronous>, transform_indices = @transform_2, window_bounds = array<i64: 1, 768>}, {transform_indices = @transform_3, window_bounds = array<i64: 8, 768>}]} {
    %c0 = arith.constant 0 : index
    %c0_0 = arith.constant 0 : index
    %0 = vector.load %arg1[%c0, %c0_0] : memref<8x768xf32, #tpu.memory_space<vmem>>, vector<8x768xf32>
    %cst = arith.constant dense<0.000000e+00> : vector<8xf32>
    %1 = vector.multi_reduction <add>, %0, %cst [1] : vector<8x768xf32> to vector<8xf32>
    %2 = vector.shape_cast %1 : vector<8xf32> to vector<8x1xf32>
    %cst_1 = arith.constant 7.680000e+02 : f32
    %3 = vector.broadcast %cst_1 : f32 to vector<8x1xf32>
    %4 = arith.divf %2, %3 : vector<8x1xf32>
    %5 = vector.broadcast %4 : vector<8x1xf32> to vector<8x768xf32>
    %6 = arith.subf %0, %5 : vector<8x768xf32>
    %7 = arith.mulf %6, %6 : vector<8x768xf32>
    %cst_2 = arith.constant dense<0.000000e+00> : vector<8xf32>
    %8 = vector.multi_reduction <add>, %7, %cst_2 [1] : vector<8x768xf32> to vector<8xf32>
    %9 = vector.shape_cast %8 : vector<8xf32> to vector<8x1xf32>
    %cst_3 = arith.constant 7.680000e+02 : f32
    %10 = vector.broadcast %cst_3 : f32 to vector<8x1xf32>
    %11 = arith.divf %9, %10 : vector<8x1xf32>
    %cst_4 = arith.constant 9.99999974E-6 : f32
    %12 = vector.broadcast %cst_4 : f32 to vector<8x1xf32>
    %13 = arith.addf %11, %12 : vector<8x1xf32>
    %14 = math.rsqrt %13 : vector<8x1xf32>
    %15 = vector.broadcast %14 : vector<8x1xf32> to vector<8x768xf32>
    %16 = arith.mulf %6, %15 : vector<8x768xf32>
    %c0_5 = arith.constant 0 : index
    %c0_6 = arith.constant 0 : index
    %17 = vector.load %arg2[%c0_5, %c0_6] : memref<1x768xf32, #tpu.memory_space<vmem>>, vector<1x768xf32>
    %18 = vector.broadcast %17 : vector<1x768xf32> to vector<8x768xf32>
    %19 = arith.mulf %16, %18 : vector<8x768xf32>
    %c0_7 = arith.constant 0 : index
    %c0_8 = arith.constant 0 : index
    %20 = vector.load %arg3[%c0_7, %c0_8] : memref<1x768xf32, #tpu.memory_space<vmem>>, vector<1x768xf32>
    %21 = vector.broadcast %20 : vector<1x768xf32> to vector<8x768xf32>
    %22 = arith.addf %19, %21 : vector<8x768xf32>
    %c0_9 = arith.constant 0 : index
    %c0_10 = arith.constant 0 : index
    %23 = vector.load %arg4[%c0_9, %c0_10] : memref<8x768xf32, #tpu.memory_space<vmem>>, vector<8x768xf32>
    tpu.vector_store %arg4[%c0_9, %c0_10], %22 {strides = array<i32>} : memref<8x768xf32, #tpu.memory_space<vmem>>, vector<8x768xf32>,
    return
  }
  func.func @transform_0(%arg0: i32) -> (i32, i32) {
    %c0_i32 = arith.constant 0 : i32
    %c0_i32_0 = arith.constant 0 : i32
    return %arg0, %c0_i32 : i32, i32
  }
  func.func @transform_1(%arg0: i32) -> (i32, i32) {
    %c0_i32 = arith.constant 0 : i32
    %c0_i32_0 = arith.constant 0 : i32
    %c0_i32_1 = arith.constant 0 : i32
    return %c0_i32, %c0_i32_0 : i32, i32
  }
  func.func @transform_2(%arg0: i32) -> (i32, i32) {
    %c0_i32 = arith.constant 0 : i32
    %c0_i32_0 = arith.constant 0 : i32
    %c0_i32_1 = arith.constant 0 : i32
    return %c0_i32, %c0_i32_0 : i32, i32
  }
  func.func @transform_3(%arg0: i32) -> (i32, i32) {
    %c0_i32 = arith.constant 0 : i32
    %c0_i32_0 = arith.constant 0 : i32
    return %arg0, %c0_i32 : i32, i32
  }
}

</mosaic_0001>

<llo_original>
// kernel: tpu_custom_call.1
$region0: #{tpu_custom_call.1}
  #allocation0 [shape = 'u32[]', space=smem, size = 0x4, offset = 0x4, fixed_abs, tag = 'smem constant byte address 0x4 - core index']
  #allocation1 [shape = 'u32[144,128]{1,0:T(1,128)}', space=vmem, size = 0x12000, scoped, tag = 'internal scratch']
  %s0 = inlined_call_operand.hbm [shape: f32[16,768], index: 0, kind: input, shape index: {}]
  %s1 = inlined_call_operand.hbm [shape: f32[1,768], index: 1, kind: input, shape index: {}]
  %s2 = inlined_call_operand.vmem [shape: f32[1,768], index: 2, kind: input, shape index: {}]
  %s3 = inlined_call_operand.hbm [shape: f32[16,768], index: 3, kind: output, shape index: {}]
  %s4 = sld [smem:[#allocation0]]
  $region53: #{tpu_custom_call.1} parent=0
    _
  %s6 = ssub.s32 1, %s4
  %s7 = scalar_select 0, %s6, %s4
  $region1: #{tpu_custom_call.1} parent=0
    #allocation2 [shape = 'u8[49152]{0}', space=vmem, size = 0xc000, scoped, tag = 'input window, operand 0']
    #allocation3 [shape = 's32[2]{0}', space=sflag, size = 0x8, scoped, tag = 'scoped memory for tpu_custom_call.1']
    #allocation4 [shape = 's32[2]{0}', space=sflag, size = 0x8, scoped, tag = 'scoped memory for tpu_custom_call.1']
    #allocation5 [shape = 'u8[3072]{0}', space=vmem, size = 0xc00, scoped, tag = 'input window, operand 1, single buffered']
    #allocation6 [shape = 's32[1]{0}', space=sflag, size = 0x4, scoped, tag = 'scoped memory for tpu_custom_call.1']
    #allocation7 [shape = 'u8[49152]{0}', space=vmem, size = 0xc000, scoped, tag = 'output window, operand 0']
    %8 = vsyncpa [#allocation3], 0
    %s9 = scalar_lea.sflag [#allocation3], 1
    %10 = vsyncpa %s9, 0
    %11 = vsyncpa [#allocation6], 0
    %12 = vsyncpa [#allocation4], 0
    %s13 = scalar_lea.sflag [#allocation4], 1
    %14 = vsyncpa %s13, 0
    loop: start=0, step=1, limit=4
    $region2: #{tpu_custom_call.1} parent=1 // loop_pre_header
      _
    $region3: #{tpu_custom_call.1} parent=1 // loop_header
      %s16 = sphi 0, %s20
      %p17 = scmp.ge.s32.totalorder %s16, 4
      %s26 = sphi 0, %s28
      %s29 = sphi 0, %s26
      %s30 = sphi 0, %s29
      %s46 = sphi 0, %s30
      %s50 = sphi 0, %s50
      %s52 = sphi 0, %s50
      %s53 = sphi 0, %s52
      %s67 = sphi 0, %s53
      %s71 = sphi 0, %s71
      %s73 = sphi 0, %s71
      %s74 = sphi 0, %s73
      %s88 = sphi 0, %s74
      %s94 = sphi 0, %s96
      %s97 = sphi 0, %s94
      %s98 = sphi 0, %s97
      %s114 = sphi 0, %s98
    $region4: #{tpu_custom_call.1} parent=1 // loop_header_branch
      %19 = sbr.rel (%p17) target = $region8
    $region5: #{tpu_custom_call.1} parent=1 // loop_body
      %s21 = ssub.s32 %s16, 1
      %s22 = ssub.s32 %s16, 2
      %s23 = sadd.s32 %s16, 1
      %s24 = ssub.s32 %s16, %s23
      %p25 = scmp.eq.s32.totalorder %s24, 0
      %s27 = sadd.s32 %s26, 1
      %s28 = scalar_select %p25, %s26, %s27
      %p31 = pneg %p25
      %p32 = scmp.eq.s32.totalorder %s16, 1
      %p33 = por %p31, %p32
      %p34 = scmp.ne.s32.totalorder %s26, %s29
      %p35 = scmp.eq.s32.totalorder %s16, 0
      %p36 = por %p34, %p35
      %p37 = scmp.ne.s32.totalorder %s26, %s29
      %p38 = scmp.eq.s32.totalorder %s21, 1
      %p39 = por %p37, %p38
      %p40 = scmp.ne.s32.totalorder %s29, %s30
      %p41 = scmp.eq.s32.totalorder %s21, 0
      %p42 = por %p40, %p41
      %p43 = scmp.ne.s32.totalorder %s29, %s30
      %p44 = scmp.eq.s32.totalorder %s22, 1
      %p45 = por %p43, %p44
      %p47 = scmp.ne.s32.totalorder %s30, %s46
      %p48 = scmp.eq.s32.totalorder %s22, 0
      %p49 = por %p47, %p48
      %s51 = sadd.s32 %s50, 1
      %p54 = scmp.eq.s32.totalorder %s16, 1
      %p55 = scmp.ne.s32.totalorder %s50, %s52
      %p56 = scmp.eq.s32.totalorder %s16, 0
      %p57 = por %p55, %p56
      %p58 = scmp.ne.s32.totalorder %s50, %s52
      %p59 = scmp.eq.s32.totalorder %s21, 1
      %p60 = por %p58, %p59
      %p61 = scmp.ne.s32.totalorder %s52, %s53
      %p62 = scmp.eq.s32.totalorder %s21, 0
      %p63 = por %p61, %p62
      %p64 = scmp.ne.s32.totalorder %s52, %s53
      %p65 = scmp.eq.s32.totalorder %s22, 1
      %p66 = por %p64, %p65
      %p68 = scmp.ne.s32.totalorder %s53, %s67
      %p69 = scmp.eq.s32.totalorder %s22, 0
      %p70 = por %p68, %p69
      %s72 = sadd.s32 %s71, 1
      %p75 = scmp.eq.s32.totalorder %s16, 1
      %p76 = scmp.ne.s32.totalorder %s71, %s73
      %p77 = scmp.eq.s32.totalorder %s16, 0
      %p78 = por %p76, %p77
      %p79 = scmp.ne.s32.totalorder %s71, %s73
      %p80 = scmp.eq.s32.totalorder %s21, 1
      %p81 = por %p79, %p80
      %p82 = scmp.ne.s32.totalorder %s73, %s74
      %p83 = scmp.eq.s32.totalorder %s21, 0
      %p84 = por %p82, %p83
      %p85 = scmp.ne.s32.totalorder %s73, %s74
      %p86 = scmp.eq.s32.totalorder %s22, 1
      %p87 = por %p85, %p86
      %p89 = scmp.ne.s32.totalorder %s74, %s88
      %p90 = scmp.eq.s32.totalorder %s22, 0
      %p91 = por %p89, %p90
      %s92 = ssub.s32 %s16, %s23
      %p93 = scmp.eq.s32.totalorder %s92, 0
      %s95 = sadd.s32 %s94, 1
      %s96 = scalar_select %p93, %s94, %s95
      %p99 = pneg %p93
      %p100 = scmp.eq.s32.totalorder %s16, 1
      %p101 = por %p99, %p100
      %p102 = scmp.ne.s32.totalorder %s94, %s97
      %p103 = scmp.eq.s32.totalorder %s16, 0
      %p104 = por %p102, %p103
      %p105 = scmp.ne.s32.totalorder %s94, %s97
      %p106 = scmp.eq.s32.totalorder %s21, 1
      %p107 = por %p105, %p106
      %p108 = scmp.ne.s32.totalorder %s97, %s98
      %p109 = scmp.eq.s32.totalorder %s21, 0
      %p110 = por %p108, %p109
      %p111 = scmp.ne.s32.totalorder %s97, %s98
      %p112 = scmp.eq.s32.totalorder %s22, 1
      %p113 = por %p111, %p112
      %p115 = scmp.ne.s32.totalorder %s98, %s114
      %p116 = scmp.eq.s32.totalorder %s22, 0
      %p117 = por %p115, %p116
      %p118 = scmp.le.s32.totalorder 1, %s16
      %p119 = scmp.lt.s32.totalorder %s16, 3
      %p120 = pnand %p118, %p119
      %p121 = pneg %p120
      // Predicated region
      $region9: #{tpu_custom_call.1} parent=5 // pred_check
        _
      $region10: #{tpu_custom_call.1} parent=5 // pred_check_branch
        %123 = sbr.rel (%p120) target = $region12
      $region11: #{tpu_custom_call.1} parent=5 // pred_region
        %s124 = ssub.s32 %s16, 1
        // Predicated region
        $region13: #{tpu_custom_call.1} parent=11 // pred_check
          %p125 = pneg %p63
        $region14: #{tpu_custom_call.1} parent=11 // pred_check_branch
          %127 = sbr.rel (%p125) target = $region16
        $region15: #{tpu_custom_call.1} parent=11 // pred_region
          %s129 = ssub.s32 96, 96
          %130 = vsyncadd [#allocation6], %s129
          %s132 = sshll.u32 [#allocation5], 4
          %s133 = int_to_ptr.vmem [resolvable:$true] %s132
          %135 = dma.hbm_to_vmem [thread:$0]  %s1, 96, %s133, [#allocation6]
        $region16: #{tpu_custom_call.1} parent=11 // pred_fallthru
          _
        // Predicated region
        $region17: #{tpu_custom_call.1} parent=11 // pred_check
          %p136 = pneg %p84
        $region18: #{tpu_custom_call.1} parent=11 // pred_check_branch
          %138 = sbr.rel (%p136) target = $region20
        $region19: #{tpu_custom_call.1} parent=11 // pred_region
          _
        $region20: #{tpu_custom_call.1} parent=11 // pred_fallthru
          _
      $region12: #{tpu_custom_call.1} parent=5 // pred_fallthru
        _
      %p139 = scmp.lt.s32.totalorder %s16, 2
      // Predicated region
      $region21: #{tpu_custom_call.1} parent=5 // pred_check
        %p140 = pneg %p139
      $region22: #{tpu_custom_call.1} parent=5 // pred_check_branch
        %142 = sbr.rel (%p140) target = $region24
      $region23: #{tpu_custom_call.1} parent=5 // pred_region
        // Predicated region
        $region25: #{tpu_custom_call.1} parent=23 // pred_check
          %p143 = pneg %p36
        $region26: #{tpu_custom_call.1} parent=23 // pred_check_branch
          %145 = sbr.rel (%p143) target = $region28
        $region27: #{tpu_custom_call.1} parent=23 // pred_region
          %s146 = sand.u32 %s26, 1
          %s147 = scalar_lea.sflag [#allocation3], %s146
          %s148 = sand.u32 %s26, 1
          %s149 = smul.addr %s148, 48
          %s150 = scalar_lea.vmem [#allocation2], %s149
          %s152 = ssub.s32 768, 768
          %153 = vsyncadd %s147, %s152
          %s154 = smul.addr %s16, 6
          %s155 = smul.addr %s154, 128
          %s156 = scalar_lea.hbm %s0, %s155
          %s158 = sshll.u32 %s150, 4
          %s159 = int_to_ptr.vmem [resolvable:$true] %s158
          %161 = dma.hbm_to_vmem [thread:$0]  %s156, 768, %s159, %s147
        $region28: #{tpu_custom_call.1} parent=23 // pred_fallthru
          _
      $region24: #{tpu_custom_call.1} parent=5 // pred_fallthru
        _
      %p162 = scmp.le.s32.totalorder 1, %s16
      %p163 = scmp.lt.s32.totalorder %s16, 3
      %p164 = pnand %p162, %p163
      %p165 = pneg %p164
      // Predicated region
      $region29: #{tpu_custom_call.1} parent=5 // pred_check
        _
      $region30: #{tpu_custom_call.1} parent=5 // pred_check_branch
        %167 = sbr.rel (%p164) target = $region32
      $region31: #{tpu_custom_call.1} parent=5 // pred_region
        %s168 = ssub.s32 %s16, 1
        %s169 = sand.u32 %s29, 1
        %s170 = scalar_lea.sflag [#allocation3], %s169
        %s171 = sand.u32 %s29, 1
        %s172 = smul.addr %s171, 48
        %s173 = scalar_lea.vmem [#allocation2], %s172
        // Predicated region
        $region33: #{tpu_custom_call.1} parent=31 // pred_check
          %p174 = pneg %p42
        $region34: #{tpu_custom_call.1} parent=31 // pred_check_branch
          %176 = sbr.rel (%p174) target = $region36
        $region35: #{tpu_custom_call.1} parent=31 // pred_region
          %177 = dma.done %s170, 768
        $region36: #{tpu_custom_call.1} parent=31 // pred_fallthru
          _
        // Predicated region
        $region37: #{tpu_custom_call.1} parent=31 // pred_check
          %p178 = pneg %p63
        $region38: #{tpu_custom_call.1} parent=31 // pred_check_branch
          %180 = sbr.rel (%p178) target = $region40
        $region39: #{tpu_custom_call.1} parent=31 // pred_region
          %181 = dma.done [#allocation6], 96
        $region40: #{tpu_custom_call.1} parent=31 // pred_fallthru
          _
        %s182 = sand.u32 %s29, 1
        %s183 = scalar_lea.sflag [#allocation3], %s182
        %s184 = sand.u32 %s29, 1
        %s185 = smul.addr %s184, 48
        %s186 = scalar_lea.vmem [#allocation2], %s185
        %p187 = pneg %p42
        %p188 = pneg %p39
        %p189 = pneg %p63
        %p190 = pneg %p60
        %p191 = pneg %p84
        %p192 = pneg %p81
        %p193 = pneg %p110
        %p194 = pneg %p107
        %s195 = sand.u32 %s97, 1
        %s196 = scalar_lea.sflag [#allocation4], %s195
        %s197 = sand.u32 %s97, 1
        %s198 = smul.addr %s197, 48
        %s199 = scalar_lea.vmem [#allocation7], %s198
        %v200 = vld [vmem:[%s173] sm:$0xff]
        %v201 = vld [vmem:[%s173 + $0x8] sm:$0xff]
        %v202 = vld [vmem:[%s173 + $0x10] sm:$0xff]
        %v203 = vld [vmem:[%s173 + $0x18] sm:$0xff]
        %v204 = vld [vmem:[%s173 + $0x20] sm:$0xff]
        %v205 = vld [vmem:[%s173 + $0x28] sm:$0xff]
        %v206 = vadd.f32 %v200, %v201
        %v207 = vadd.f32 %v206, %v202
        %v208 = vadd.f32 %v207, %v203
        %v209 = vadd.f32 %v208, %v204
        %v210 = vadd.f32 %v209, %v205
        %211 = vadd.xlane.f32.xlu0 %v210
        %v212 = vpop.xlane.xlu0 %211
        %v213 = vrcp.pop 768.0
        %v214 = vmul.f32 %v212, %v213
        %v215 = vsub.f32 %v200, %v214
        %v216 = vsub.f32 %v201, %v214
        %v217 = vsub.f32 %v202, %v214
        %v218 = vsub.f32 %v203, %v214
        %v219 = vsub.f32 %v204, %v214
        %v220 = vsub.f32 %v205, %v214
        %v221 = vmul.f32 %v215, %v215
        %v222 = vmul.f32 %v216, %v216
        %v223 = vmul.f32 %v217, %v217
        %v224 = vmul.f32 %v218, %v218
        %v225 = vmul.f32 %v219, %v219
        %v226 = vmul.f32 %v220, %v220
        %v227 = vadd.f32 %v221, %v222
        %v228 = vadd.f32 %v227, %v223
        %v229 = vadd.f32 %v228, %v224
        %v230 = vadd.f32 %v229, %v225
        %v231 = vadd.f32 %v230, %v226
        %232 = vadd.xlane.f32.xlu0 %v231
        %v233 = vpop.xlane.xlu0 %232
        %v234 = vmul.f32 %v233, %v213
        %v235 = vadd.f32 %v234, 1e-05
        %v236 = vrsqrt.pop %v235
        %v237 = vmul.f32 %v215, %v236
        %v238 = vmul.f32 %v216, %v236
        %v239 = vmul.f32 %v217, %v236
        %v240 = vmul.f32 %v218, %v236
        %v241 = vmul.f32 %v219, %v236
        %v242 = vmul.f32 %v220, %v236
        %v243 = vld [vmem:[#allocation5] sm:$0x3f]
        %v245 = vlaneseq
        %v246 = vshrl.u32 %v245, 7
        %v247 = vsub.s32 0, %v246
        %v248 = vrot.slane %v243, %v247
        %v249 = vlaneseq
        %v250 = vshrl.u32 %v249, 7
        %v251 = vsub.s32 1, %v250
        %v252 = vrot.slane %v243, %v251
        %v253 = vlaneseq
        %v254 = vshrl.u32 %v253, 7
        %v255 = vsub.s32 2, %v254
        %v256 = vrot.slane %v243, %v255
        %v257 = vlaneseq
        %v258 = vshrl.u32 %v257, 7
        %v259 = vsub.s32 3, %v258
        %v260 = vrot.slane %v243, %v259
        %v261 = vlaneseq
        %v262 = vshrl.u32 %v261, 7
        %v263 = vsub.s32 4, %v262
        %v264 = vrot.slane %v243, %v263
        %v265 = vlaneseq
        %v266 = vshrl.u32 %v265, 7
        %v267 = vsub.s32 5, %v266
        %v268 = vrot.slane %v243, %v267
        %v275 = vmul.f32 %v237, %v248
        %v276 = vmul.f32 %v238, %v252
        %v277 = vmul.f32 %v239, %v256
        %v278 = vmul.f32 %v240, %v260
        %v279 = vmul.f32 %v241, %v264
        %v280 = vmul.f32 %v242, %v268
        %v281 = vld [vmem:[%s2] sm:$0x3f]
        %v283 = vlaneseq
        %v284 = vshrl.u32 %v283, 7
        %v285 = vsub.s32 0, %v284
        %v286 = vrot.slane %v281, %v285
        %v287 = vlaneseq
        %v288 = vshrl.u32 %v287, 7
        %v289 = vsub.s32 1, %v288
        %v290 = vrot.slane %v281, %v289
        %v291 = vlaneseq
        %v292 = vshrl.u32 %v291, 7
        %v293 = vsub.s32 2, %v292
        %v294 = vrot.slane %v281, %v293
        %v295 = vlaneseq
        %v296 = vshrl.u32 %v295, 7
        %v297 = vsub.s32 3, %v296
        %v298 = vrot.slane %v281, %v297
        %v299 = vlaneseq
        %v300 = vshrl.u32 %v299, 7
        %v301 = vsub.s32 4, %v300
        %v302 = vrot.slane %v281, %v301
        %v303 = vlaneseq
        %v304 = vshrl.u32 %v303, 7
        %v305 = vsub.s32 5, %v304
        %v306 = vrot.slane %v281, %v305
        %v313 = vadd.f32 %v275, %v286
        %v314 = vadd.f32 %v276, %v290
        %v315 = vadd.f32 %v277, %v294
        %v316 = vadd.f32 %v278, %v298
        %v317 = vadd.f32 %v279, %v302
        %v318 = vadd.f32 %v280, %v306
        %319 = vst [vmem:[%s199] sm:$0xff] %v313
        %320 = vst [vmem:[%s199 + $0x8] sm:$0xff] %v314
        %321 = vst [vmem:[%s199 + $0x10] sm:$0xff] %v315
        %322 = vst [vmem:[%s199 + $0x18] sm:$0xff] %v316
        %323 = vst [vmem:[%s199 + $0x20] sm:$0xff] %v317
        %324 = vst [vmem:[%s199 + $0x28] sm:$0xff] %v318
        %s325 = sand.u32 %s97, 1
        %s326 = scalar_lea.sflag [#allocation4], %s325
        %s327 = sand.u32 %s97, 1
        %s328 = smul.addr %s327, 48
        %s329 = scalar_lea.vmem [#allocation7], %s328
        // Predicated region
        $region41: #{tpu_custom_call.1} parent=31 // pred_check
          %p330 = pneg %p107
        $region42: #{tpu_custom_call.1} parent=31 // pred_check_branch
          %332 = sbr.rel (%p330) target = $region44
        $region43: #{tpu_custom_call.1} parent=31 // pred_region
          %s334 = ssub.s32 768, 768
          %335 = vsyncadd %s326, %s334
          %s336 = smul.addr %s21, 6
          %s337 = smul.addr %s336, 128
          %s338 = scalar_lea.hbm %s3, %s337
          %s340 = sshll.u32 %s329, 4
          %s341 = int_to_ptr.vmem [resolvable:$true] %s340
          %343 = dma.vmem_to_hbm [thread:$0]  %s341, 768, %s338, %s326
        $region44: #{tpu_custom_call.1} parent=31 // pred_fallthru
          _
      $region32: #{tpu_custom_call.1} parent=5 // pred_fallthru
        _
      %p344 = scmp.le.s32.totalorder 2, %s16
      // Predicated region
      $region45: #{tpu_custom_call.1} parent=5 // pred_check
        %p345 = pneg %p344
      $region46: #{tpu_custom_call.1} parent=5 // pred_check_branch
        %347 = sbr.rel (%p345) target = $region48
      $region47: #{tpu_custom_call.1} parent=5 // pred_region
        %s348 = ssub.s32 %s16, 2
        // Predicated region
        $region49: #{tpu_custom_call.1} parent=47 // pred_check
          %p349 = pneg %p113
        $region50: #{tpu_custom_call.1} parent=47 // pred_check_branch
          %351 = sbr.rel (%p349) target = $region52
        $region51: #{tpu_custom_call.1} parent=47 // pred_region
          %s352 = sand.u32 %s98, 1
          %s353 = scalar_lea.sflag [#allocation4], %s352
          %s354 = sand.u32 %s98, 1
          %s355 = smul.addr %s354, 48
          %s356 = scalar_lea.vmem [#allocation7], %s355
          %357 = dma.done %s353, 768
        $region52: #{tpu_custom_call.1} parent=47 // pred_fallthru
          _
      $region48: #{tpu_custom_call.1} parent=5 // pred_fallthru
        _
    $region6: #{tpu_custom_call.1} parent=1 // loop_footer
      %s20 = sadd.s32 1, %s16
    $region7: #{tpu_custom_call.1} parent=1 // loop_footer_branch
      %15 = sbr.rel target = $region3
    $region8: #{tpu_custom_call.1} parent=1 // loop_exit
      _
    %358 = vsyncpa [#allocation3], 1
    %s359 = scalar_lea.sflag [#allocation3], 1
    %360 = vsyncpa %s359, 1
    %361 = vsyncpa [#allocation6], 1
    %362 = vsyncpa [#allocation4], 1
    %s363 = scalar_lea.sflag [#allocation4], 1
    %364 = vsyncpa %s363, 1

</llo_original>
